<compile_context>
chip_gen: v7x
topology: tpu7x:2x2x1
jax: 0.10.0
libtpu: 0.0.40
codegen_flags: <defaults>
</compile_context>

<pallas_src>
import functools

import jax
import jax.numpy as jnp
from jax.experimental import pallas as pl
from jax.experimental.pallas import tpu as pltpu

N_CLASSES = 182          # bird species
CALL_COL = N_CLASSES     # column of the fused weight holding the call/nocall head
N_PAD = 256              # class dim (+ call column) padded to a lane multiple
SOUNDSCAPE_LEN = 48      # segments per 4-minute soundscape (module contract)


def _two_stage_kernel(x_ref, w_ref, b_ref, o_ref):
    # x_ref: (BM, D) bf16 | w_ref: (D, 256) bf16 | b_ref: (1, 256) f32 | o_ref: (BM, 256) f32
    logits = jnp.dot(x_ref[...], w_ref[...], preferred_element_type=jnp.float32)
    preds = jax.nn.sigmoid(logits + b_ref[...])        # f32: cols 0..181 species, col 182 call
    call = preds[:, CALL_COL:CALL_COL + 1]              # (BM, 1) call / nocall probability
    o_ref[...] = (preds * call).astype(o_ref.dtype)     # broadcast over the 256 class lanes


@functools.partial(jax.jit, static_argnames=("block_b",))
def two_stage_forward(x_nchw, w1, b1, w2, b2, *, block_b=SOUNDSCAPE_LEN):
    B = x_nchw.shape[0]
    D = x_nchw.shape[1] * x_nchw.shape[2] * x_nchw.shape[3]
    assert block_b % 8 == 0, "batch block must be a sublane multiple"

    # --- plain-JAX glue: flatten NCHW, fuse the two heads, cast to bf16 -----------------
    x_flat = x_nchw.reshape(B, D).astype(jnp.bfloat16)

    w_fused = jnp.zeros((D, N_PAD), jnp.bfloat16)
    w_fused = w_fused.at[:, :N_CLASSES].set(w2.astype(jnp.bfloat16))
    w_fused = w_fused.at[:, CALL_COL:CALL_COL + 1].set(w1.astype(jnp.bfloat16))

    b_fused = jnp.zeros((1, N_PAD), jnp.float32)
    b_fused = b_fused.at[:, :N_CLASSES].set(b2.reshape(1, -1).astype(jnp.float32))
    b_fused = b_fused.at[:, CALL_COL:CALL_COL + 1].set(b1.reshape(1, 1).astype(jnp.float32))

    num_blocks = pl.cdiv(B, block_b)
    b_pad = num_blocks * block_b
    if b_pad != B:
        x_flat = jnp.pad(x_flat, ((0, b_pad - B), (0, 0)))

    out = pl.pallas_call(
        _two_stage_kernel,
        out_shape=jax.ShapeDtypeStruct((b_pad, N_PAD), jnp.float32),
        grid=(num_blocks,),
        in_specs=[
            pl.BlockSpec((block_b, D), lambda i: (i, 0)),
            pl.BlockSpec((D, N_PAD), lambda i: (0, 0)),   # fused weights: VMEM-resident
            pl.BlockSpec((1, N_PAD), lambda i: (0, 0)),   # fused bias: VMEM-resident
        ],
        out_specs=pl.BlockSpec((block_b, N_PAD), lambda i: (i, 0)),
        compiler_params=pltpu.CompilerParams(dimension_semantics=("parallel",)),
    )(x_flat, w_fused, b_fused)

    # lane-dense kernel output -> actual (B, 182) predictions
    return out[:B, :N_CLASSES].astype(x_nchw.dtype)


def _reference(x_nchw, w1, b1, w2, b2):
    B = x_nchw.shape[0]
    x_flat = x_nchw.reshape(B, -1).astype(jnp.float32)
    p1 = jax.nn.sigmoid(x_flat @ w1.astype(jnp.float32) + b1)
    p2 = jax.nn.sigmoid(x_flat @ w2.astype(jnp.float32) + b2)
    return (p1 * p2).astype(x_nchw.dtype)


if __name__ == "__main__":
    # Two stacked 4-minute soundscapes of shape (48, C, H, W) each -> grid of 2 blocks.
    NUM_SOUNDSCAPES = 2
    B, C, H, W = NUM_SOUNDSCAPES * SOUNDSCAPE_LEN, 4, 16, 16
    D = C * H * W

    key = jax.random.PRNGKey(0)
    kx, k1, k2, kb1, kb2 = jax.random.split(key, 5)

    x = jax.random.normal(kx, (B, C, H, W), dtype=jnp.float32)

    # Deterministic synthetic parameters for the two sub-models.
    w1 = jax.random.normal(k1, (D, 1), dtype=jnp.float32) * (1.0 / D) ** 0.5
    b1 = jax.random.normal(kb1, (1, 1), dtype=jnp.float32) * 0.01
    w2 = jax.random.normal(k2, (D, N_CLASSES), dtype=jnp.float32) * (1.0 / D) ** 0.5
    b2 = jax.random.normal(kb2, (1, N_CLASSES), dtype=jnp.float32) * 0.01

    out = jax.block_until_ready(two_stage_forward(x, w1, b1, w2, b2))
    ref = _reference(x, w1, b1, w2, b2)

    assert out.shape == (B, N_CLASSES), out.shape
    # bf16 inputs + f32 accumulate vs. the f32 reference -> loosened tolerance.
    assert jnp.allclose(out, ref, atol=3e-2, rtol=2e-2), float(jnp.max(jnp.abs(out - ref)))

    print("KERNEL_OK")
</pallas_src>

<mosaic_0001>
module attributes {stable_mosaic.version = 11 : i64} {
  func.func @_two_stage_kernel(%arg0: i32, %arg1: memref<48x1024xbf16, #tpu.memory_space<vmem>>, %arg2: memref<1024x256xbf16, #tpu.memory_space<vmem>>, %arg3: memref<1x256xf32, #tpu.memory_space<vmem>>, %arg4: memref<48x256xf32, #tpu.memory_space<vmem>>) attributes {dimension_semantics = [#tpu.dimension_semantics<parallel>], iteration_bounds = array<i64: 2>, scalar_prefetch = 0 : i64, scratch_operands = 0 : i64, tpu.core_type = #tpu.core_type<tc>, window_params = [{transform_indices = @transform_0, window_bounds = array<i64: 48, 1024>}, {pipeline_mode = #tpu.pipeline_mode<synchronous>, transform_indices = @transform_1, window_bounds = array<i64: 1024, 256>}, {pipeline_mode = #tpu.pipeline_mode<synchronous>, transform_indices = @transform_2, window_bounds = array<i64: 1, 256>}, {transform_indices = @transform_3, window_bounds = array<i64: 48, 256>}]} {
    %c0 = arith.constant 0 : index
    %c0_0 = arith.constant 0 : index
    %0 = vector.load %arg1[%c0, %c0_0] : memref<48x1024xbf16, #tpu.memory_space<vmem>>, vector<48x1024xbf16>
    %c0_1 = arith.constant 0 : index
    %c0_2 = arith.constant 0 : index
    %1 = vector.load %arg2[%c0_1, %c0_2] : memref<1024x256xbf16, #tpu.memory_space<vmem>>, vector<1024x256xbf16>
    %cst = arith.constant dense<0.000000e+00> : vector<48x256xf32>
    %2 = tpu.matmul %0, %1, %cst {dimension_numbers = #tpu.dot_dimension_numbers<[1], [0], [0], [1], [0, 0, 1, 1], [], []>} : vector<48x1024xbf16>, vector<1024x256xbf16>, vector<48x256xf32> -> vector<48x256xf32>
    %c0_3 = arith.constant 0 : index
    %c0_4 = arith.constant 0 : index
    %3 = vector.load %arg3[%c0_3, %c0_4] : memref<1x256xf32, #tpu.memory_space<vmem>>, vector<1x256xf32>
    %4 = vector.broadcast %3 : vector<1x256xf32> to vector<48x256xf32>
    %5 = arith.addf %2, %4 : vector<48x256xf32>
    %6 = arith.negf %5 : vector<48x256xf32>
    %7 = math.exp %6 : vector<48x256xf32>
    %cst_5 = arith.constant 1.000000e+00 : f32
    %8 = vector.broadcast %cst_5 : f32 to vector<48x256xf32>
    %9 = arith.addf %8, %7 : vector<48x256xf32>
    %10 = arith.divf %8, %9 : vector<48x256xf32>
    %11 = vector.extract_strided_slice %10 {offsets = [0, 182], sizes = [48, 1], strides = [1, 1]} : vector<48x256xf32> to vector<48x1xf32>
    %12 = vector.broadcast %11 : vector<48x1xf32> to vector<48x256xf32>
    %13 = arith.mulf %10, %12 : vector<48x256xf32>
    %c0_6 = arith.constant 0 : index
    %c0_7 = arith.constant 0 : index
    %14 = vector.load %arg4[%c0_6, %c0_7] : memref<48x256xf32, #tpu.memory_space<vmem>>, vector<48x256xf32>
    tpu.vector_store %arg4[%c0_6, %c0_7], %13 {strides = array<i32>} : memref<48x256xf32, #tpu.memory_space<vmem>>, vector<48x256xf32>,
    return
  }
  func.func @transform_0(%arg0: i32) -> (i32, i32) {
    %c0_i32 = arith.constant 0 : i32
    %c0_i32_0 = arith.constant 0 : i32
    return %arg0, %c0_i32 : i32, i32
  }
  func.func @transform_1(%arg0: i32) -> (i32, i32) {
    %c0_i32 = arith.constant 0 : i32
    %c0_i32_0 = arith.constant 0 : i32
    %c0_i32_1 = arith.constant 0 : i32
    return %c0_i32, %c0_i32_0 : i32, i32
  }
  func.func @transform_2(%arg0: i32) -> (i32, i32) {
    %c0_i32 = arith.constant 0 : i32
    %c0_i32_0 = arith.constant 0 : i32
    %c0_i32_1 = arith.constant 0 : i32
    return %c0_i32, %c0_i32_0 : i32, i32
  }
  func.func @transform_3(%arg0: i32) -> (i32, i32) {
    %c0_i32 = arith.constant 0 : i32
    %c0_i32_0 = arith.constant 0 : i32
    return %arg0, %c0_i32 : i32, i32
  }
}

</mosaic_0001>

<llo_original>
// kernel: two_stage_forward.1
$region0: #{two_stage_forward.1}
  #allocation0 [shape = 'u32[]', space=smem, size = 0x4, offset = 0x4, fixed_abs, tag = 'smem constant byte address 0x4 - core index']
  #allocation1 [shape = 'u32[144,128]{1,0:T(1,128)}', space=vmem, size = 0x12000, scoped, tag = 'internal scratch']
  %s0 = inlined_call_operand.vmem [shape: bf16[96,1024], index: 0, kind: input, shape index: {}]
  %s1 = inlined_call_operand.vmem [shape: bf16[1024,256], index: 1, kind: input, shape index: {}]
  %s2 = inlined_call_operand.vmem [shape: f32[1,256], index: 2, kind: input, shape index: {}]
  %s3 = inlined_call_operand.vmem [shape: f32[96,256], index: 3, kind: output, shape index: {}]
  %s4 = sld [smem:[#allocation0]]
  $region45: #{two_stage_forward.1} parent=0
    _
  %s6 = ssub.s32 1, %s4
  %s7 = scalar_select 0, %s6, %s4
  loop: start=0, step=1, limit=4
  $region2: #{two_stage_forward.1} parent=0 // loop_pre_header
    _
  $region3: #{two_stage_forward.1} parent=0 // loop_header
    %s9 = sphi 0, %s13
    %p10 = scmp.ge.s32.totalorder %s9, 4
    %s19 = sphi 0, %s21
    %s22 = sphi 0, %s19
    %s23 = sphi 0, %s22
    %s39 = sphi 0, %s23
    %s43 = sphi 0, %s43
    %s45 = sphi 0, %s43
    %s46 = sphi 0, %s45
    %s60 = sphi 0, %s46
    %s64 = sphi 0, %s64
    %s66 = sphi 0, %s64
    %s67 = sphi 0, %s66
    %s81 = sphi 0, %s67
    %s87 = sphi 0, %s89
    %s90 = sphi 0, %s87
    %s91 = sphi 0, %s90
    %s107 = sphi 0, %s91
  $region4: #{two_stage_forward.1} parent=0 // loop_header_branch
    %12 = sbr.rel (%p10) target = $region8
  $region5: #{two_stage_forward.1} parent=0 // loop_body
    %s14 = ssub.s32 %s9, 1
    %s15 = ssub.s32 %s9, 2
    %s16 = sadd.s32 %s9, 1
    %s17 = ssub.s32 %s9, %s16
    %p18 = scmp.eq.s32.totalorder %s17, 0
    %s20 = sadd.s32 %s19, 1
    %s21 = scalar_select %p18, %s19, %s20
    %p24 = pneg %p18
    %p25 = scmp.eq.s32.totalorder %s9, 1
    %p26 = por %p24, %p25
    %p27 = scmp.ne.s32.totalorder %s19, %s22
    %p28 = scmp.eq.s32.totalorder %s9, 0
    %p29 = por %p27, %p28
    %p30 = scmp.ne.s32.totalorder %s19, %s22
    %p31 = scmp.eq.s32.totalorder %s14, 1
    %p32 = por %p30, %p31
    %p33 = scmp.ne.s32.totalorder %s22, %s23
    %p34 = scmp.eq.s32.totalorder %s14, 0
    %p35 = por %p33, %p34
    %p36 = scmp.ne.s32.totalorder %s22, %s23
    %p37 = scmp.eq.s32.totalorder %s15, 1
    %p38 = por %p36, %p37
    %p40 = scmp.ne.s32.totalorder %s23, %s39
    %p41 = scmp.eq.s32.totalorder %s15, 0
    %p42 = por %p40, %p41
    %s44 = sadd.s32 %s43, 1
    %p47 = scmp.eq.s32.totalorder %s9, 1
    %p48 = scmp.ne.s32.totalorder %s43, %s45
    %p49 = scmp.eq.s32.totalorder %s9, 0
    %p50 = por %p48, %p49
    %p51 = scmp.ne.s32.totalorder %s43, %s45
    %p52 = scmp.eq.s32.totalorder %s14, 1
    %p53 = por %p51, %p52
    %p54 = scmp.ne.s32.totalorder %s45, %s46
    %p55 = scmp.eq.s32.totalorder %s14, 0
    %p56 = por %p54, %p55
    %p57 = scmp.ne.s32.totalorder %s45, %s46
    %p58 = scmp.eq.s32.totalorder %s15, 1
    %p59 = por %p57, %p58
    %p61 = scmp.ne.s32.totalorder %s46, %s60
    %p62 = scmp.eq.s32.totalorder %s15, 0
    %p63 = por %p61, %p62
    %s65 = sadd.s32 %s64, 1
    %p68 = scmp.eq.s32.totalorder %s9, 1
    %p69 = scmp.ne.s32.totalorder %s64, %s66
    %p70 = scmp.eq.s32.totalorder %s9, 0
    %p71 = por %p69, %p70
    %p72 = scmp.ne.s32.totalorder %s64, %s66
    %p73 = scmp.eq.s32.totalorder %s14, 1
    %p74 = por %p72, %p73
    %p75 = scmp.ne.s32.totalorder %s66, %s67
    %p76 = scmp.eq.s32.totalorder %s14, 0
    %p77 = por %p75, %p76
    %p78 = scmp.ne.s32.totalorder %s66, %s67
    %p79 = scmp.eq.s32.totalorder %s15, 1
    %p80 = por %p78, %p79
    %p82 = scmp.ne.s32.totalorder %s67, %s81
    %p83 = scmp.eq.s32.totalorder %s15, 0
    %p84 = por %p82, %p83
    %s85 = ssub.s32 %s9, %s16
    %p86 = scmp.eq.s32.totalorder %s85, 0
    %s88 = sadd.s32 %s87, 1
    %s89 = scalar_select %p86, %s87, %s88
    %p92 = pneg %p86
    %p93 = scmp.eq.s32.totalorder %s9, 1
    %p94 = por %p92, %p93
    %p95 = scmp.ne.s32.totalorder %s87, %s90
    %p96 = scmp.eq.s32.totalorder %s9, 0
    %p97 = por %p95, %p96
    %p98 = scmp.ne.s32.totalorder %s87, %s90
    %p99 = scmp.eq.s32.totalorder %s14, 1
    %p100 = por %p98, %p99
    %p101 = scmp.ne.s32.totalorder %s90, %s91
    %p102 = scmp.eq.s32.totalorder %s14, 0
    %p103 = por %p101, %p102
    %p104 = scmp.ne.s32.totalorder %s90, %s91
    %p105 = scmp.eq.s32.totalorder %s15, 1
    %p106 = por %p104, %p105
    %p108 = scmp.ne.s32.totalorder %s91, %s107
    %p109 = scmp.eq.s32.totalorder %s15, 0
    %p110 = por %p108, %p109
    %p111 = scmp.le.s32.totalorder 1, %s9
    %p112 = scmp.lt.s32.totalorder %s9, 3
    %p113 = pnand %p111, %p112
    %p114 = pneg %p113
    // Predicated region
    $region9: #{two_stage_forward.1} parent=5 // pred_check
      _
    $region10: #{two_stage_forward.1} parent=5 // pred_check_branch
      %116 = sbr.rel (%p113) target = $region12
    $region11: #{two_stage_forward.1} parent=5 // pred_region
      %s117 = ssub.s32 %s9, 1
      // Predicated region
      $region13: #{two_stage_forward.1} parent=11 // pred_check
        %p118 = pneg %p56
      $region14: #{two_stage_forward.1} parent=11 // pred_check_branch
        %120 = sbr.rel (%p118) target = $region16
      $region15: #{two_stage_forward.1} parent=11 // pred_region
        _
      $region16: #{two_stage_forward.1} parent=11 // pred_fallthru
        _
      // Predicated region
      $region17: #{two_stage_forward.1} parent=11 // pred_check
        %p121 = pneg %p77
      $region18: #{two_stage_forward.1} parent=11 // pred_check_branch
        %123 = sbr.rel (%p121) target = $region20
      $region19: #{two_stage_forward.1} parent=11 // pred_region
        _
      $region20: #{two_stage_forward.1} parent=11 // pred_fallthru
        _
    $region12: #{two_stage_forward.1} parent=5 // pred_fallthru
      _
    %p124 = scmp.lt.s32.totalorder %s9, 2
    // Predicated region
    $region21: #{two_stage_forward.1} parent=5 // pred_check
      %p125 = pneg %p124
    $region22: #{two_stage_forward.1} parent=5 // pred_check_branch
      %127 = sbr.rel (%p125) target = $region24
    $region23: #{two_stage_forward.1} parent=5 // pred_region
      // Predicated region
      $region25: #{two_stage_forward.1} parent=23 // pred_check
        %p128 = pneg %p29
      $region26: #{two_stage_forward.1} parent=23 // pred_check_branch
        %130 = sbr.rel (%p128) target = $region28
      $region27: #{two_stage_forward.1} parent=23 // pred_region
        %s131 = smul.u32 6, %s9
        %p132 = scmp.lt.s32.totalorder %s131, 11
        %s133 = scalar_select %p132, %s131, 11
        %s134 = smul.addr %s133, 8
        %s135 = smul.addr %s134, 4
        %s136 = scalar_lea.vmem %s0, %s135
        %s137 = smul.u32 6, %s9
      $region28: #{two_stage_forward.1} parent=23 // pred_fallthru
        _
    $region24: #{two_stage_forward.1} parent=5 // pred_fallthru
      _
    %p138 = scmp.le.s32.totalorder 1, %s9
    %p139 = scmp.lt.s32.totalorder %s9, 3
    %p140 = pnand %p138, %p139
    %p141 = pneg %p140
    // Predicated region
    $region29: #{two_stage_forward.1} parent=5 // pred_check
      _
    $region30: #{two_stage_forward.1} parent=5 // pred_check_branch
      %143 = sbr.rel (%p140) target = $region32
    $region31: #{two_stage_forward.1} parent=5 // pred_region
      %s144 = ssub.s32 %s9, 1
      %s145 = smul.u32 6, %s14
      %p146 = scmp.lt.s32.totalorder %s145, 11
      %s147 = scalar_select %p146, %s145, 11
      %s148 = smul.addr %s147, 8
      %s149 = smul.addr %s148, 4
      %s150 = scalar_lea.vmem %s0, %s149
      %p151 = pneg %p35
      %p152 = pneg %p32
      %p153 = pneg %p56
      %p154 = pneg %p53
      %p155 = pneg %p77
      %p156 = pneg %p74
      %p157 = pneg %p103
      %p158 = pneg %p100
      %s159 = smul.u32 6, %s14
      %p160 = scmp.lt.s32.totalorder %s159, 11
      %s161 = scalar_select %p160, %s159, 11
      %s162 = smul.addr %s161, 2
      %s163 = smul.addr %s162, 8
      %s164 = scalar_lea.vmem %s3, %s163
      %s165 = smul.u32 6, %s14
      %p166 = scmp.lt.s32.totalorder %s165, 11
      %s167 = scalar_select %p166, %s165, 11
      %s168 = smul.addr %s167, 8
      %s169 = smul.addr %s168, 4
      %s170 = scalar_lea.vmem %s0, %s169
      %s171 = smul.u32 6, %s14
      %s172 = smul.u32 6, %s14
      %p173 = scmp.lt.s32.totalorder %s172, 11
      %s174 = scalar_select %p173, %s172, 11
      %s175 = smul.addr %s174, 2
      %s176 = smul.addr %s175, 8
      %s177 = scalar_lea.vmem %s3, %s176
      %s178 = smul.u32 6, %s14
      %v179 = vld [vmem:[%s170] sm:$0xff]
      %v180 = vld [vmem:[%s170 + $0x8] sm:$0xff]
      %v181 = vld [vmem:[%s170 + $0x10] sm:$0xff]
      %v182 = vld [vmem:[%s170 + $0x18] sm:$0xff]
      %v183 = vld [vmem:[%s170 + $0x20] sm:$0xff]
      %v184 = vld [vmem:[%s170 + $0x28] sm:$0xff]
      %v185 = vld [vmem:[%s170 + $0x30] sm:$0xff]
      %v186 = vld [vmem:[%s170 + $0x38] sm:$0xff]
      %v187 = vld [vmem:[%s170 + $0x40] sm:$0xff]
      %v188 = vld [vmem:[%s170 + $0x48] sm:$0xff]
      %v189 = vld [vmem:[%s170 + $0x50] sm:$0xff]
      %v190 = vld [vmem:[%s170 + $0x58] sm:$0xff]
      %v191 = vld [vmem:[%s170 + $0x60] sm:$0xff]
      %v192 = vld [vmem:[%s170 + $0x68] sm:$0xff]
      %v193 = vld [vmem:[%s170 + $0x70] sm:$0xff]
      %v194 = vld [vmem:[%s170 + $0x78] sm:$0xff]
      %v195 = vld [vmem:[%s170 + $0x80] sm:$0xff]
      %v196 = vld [vmem:[%s170 + $0x88] sm:$0xff]
      %v197 = vld [vmem:[%s170 + $0x90] sm:$0xff]
      %v198 = vld [vmem:[%s170 + $0x98] sm:$0xff]
      %v199 = vld [vmem:[%s170 + $0xa0] sm:$0xff]
      %v200 = vld [vmem:[%s170 + $0xa8] sm:$0xff]
      %v201 = vld [vmem:[%s170 + $0xb0] sm:$0xff]
      %v202 = vld [vmem:[%s170 + $0xb8] sm:$0xff]
      %v203 = vld [vmem:[%s1] sm:$0xff]
      %v204 = vld [vmem:[%s1 + $0x8] sm:$0xff]
      %v205 = vld [vmem:[%s1 + $0x10] sm:$0xff]
      %v206 = vld [vmem:[%s1 + $0x18] sm:$0xff]
      %v207 = vld [vmem:[%s1 + $0x20] sm:$0xff]
      %v208 = vld [vmem:[%s1 + $0x28] sm:$0xff]
      %v209 = vld [vmem:[%s1 + $0x30] sm:$0xff]
      %v210 = vld [vmem:[%s1 + $0x38] sm:$0xff]
      %v211 = vld [vmem:[%s1 + $0x40] sm:$0xff]
      %v212 = vld [vmem:[%s1 + $0x48] sm:$0xff]
      %v213 = vld [vmem:[%s1 + $0x50] sm:$0xff]
      %v214 = vld [vmem:[%s1 + $0x58] sm:$0xff]
      %v215 = vld [vmem:[%s1 + $0x60] sm:$0xff]
      %v216 = vld [vmem:[%s1 + $0x68] sm:$0xff]
      %v217 = vld [vmem:[%s1 + $0x70] sm:$0xff]
      %v218 = vld [vmem:[%s1 + $0x78] sm:$0xff]
      %v219 = vld [vmem:[%s1 + $0x80] sm:$0xff]
      %v220 = vld [vmem:[%s1 + $0x88] sm:$0xff]
      %v221 = vld [vmem:[%s1 + $0x90] sm:$0xff]
      %v222 = vld [vmem:[%s1 + $0x98] sm:$0xff]
      %v223 = vld [vmem:[%s1 + $0xa0] sm:$0xff]
      %v224 = vld [vmem:[%s1 + $0xa8] sm:$0xff]
      %v225 = vld [vmem:[%s1 + $0xb0] sm:$0xff]
      %v226 = vld [vmem:[%s1 + $0xb8] sm:$0xff]
      %v227 = vld [vmem:[%s1 + $0xc0] sm:$0xff]
      %v228 = vld [vmem:[%s1 + $0xc8] sm:$0xff]
      %v229 = vld [vmem:[%s1 + $0xd0] sm:$0xff]
      %v230 = vld [vmem:[%s1 + $0xd8] sm:$0xff]
      %v231 = vld [vmem:[%s1 + $0xe0] sm:$0xff]
      %v232 = vld [vmem:[%s1 + $0xe8] sm:$0xff]
      %v233 = vld [vmem:[%s1 + $0xf0] sm:$0xff]
      %v234 = vld [vmem:[%s1 + $0xf8] sm:$0xff]
      %v235 = vld [vmem:[%s1 + $0x100] sm:$0xff]
      %v236 = vld [vmem:[%s1 + $0x108] sm:$0xff]
      %v237 = vld [vmem:[%s1 + $0x110] sm:$0xff]
      %v238 = vld [vmem:[%s1 + $0x118] sm:$0xff]
      %v239 = vld [vmem:[%s1 + $0x120] sm:$0xff]
      %v240 = vld [vmem:[%s1 + $0x128] sm:$0xff]
      %v241 = vld [vmem:[%s1 + $0x130] sm:$0xff]
      %v242 = vld [vmem:[%s1 + $0x138] sm:$0xff]
      %v243 = vld [vmem:[%s1 + $0x140] sm:$0xff]
      %v244 = vld [vmem:[%s1 + $0x148] sm:$0xff]
      %v245 = vld [vmem:[%s1 + $0x150] sm:$0xff]
      %v246 = vld [vmem:[%s1 + $0x158] sm:$0xff]
      %v247 = vld [vmem:[%s1 + $0x160] sm:$0xff]
      %v248 = vld [vmem:[%s1 + $0x168] sm:$0xff]
      %v249 = vld [vmem:[%s1 + $0x170] sm:$0xff]
      %v250 = vld [vmem:[%s1 + $0x178] sm:$0xff]
      %v251 = vld [vmem:[%s1 + $0x180] sm:$0xff]
      %v252 = vld [vmem:[%s1 + $0x188] sm:$0xff]
      %v253 = vld [vmem:[%s1 + $0x190] sm:$0xff]
      %v254 = vld [vmem:[%s1 + $0x198] sm:$0xff]
      %v255 = vld [vmem:[%s1 + $0x1a0] sm:$0xff]
      %v256 = vld [vmem:[%s1 + $0x1a8] sm:$0xff]
      %v257 = vld [vmem:[%s1 + $0x1b0] sm:$0xff]
      %v258 = vld [vmem:[%s1 + $0x1b8] sm:$0xff]
      %v259 = vld [vmem:[%s1 + $0x1c0] sm:$0xff]
      %v260 = vld [vmem:[%s1 + $0x1c8] sm:$0xff]
      %v261 = vld [vmem:[%s1 + $0x1d0] sm:$0xff]
      %v262 = vld [vmem:[%s1 + $0x1d8] sm:$0xff]
      %v263 = vld [vmem:[%s1 + $0x1e0] sm:$0xff]
      %v264 = vld [vmem:[%s1 + $0x1e8] sm:$0xff]
      %v265 = vld [vmem:[%s1 + $0x1f0] sm:$0xff]
      %v266 = vld [vmem:[%s1 + $0x1f8] sm:$0xff]
      %v267 = vld [vmem:[%s1 + $0x200] sm:$0xff]
      %v268 = vld [vmem:[%s1 + $0x208] sm:$0xff]
      %v269 = vld [vmem:[%s1 + $0x210] sm:$0xff]
      %v270 = vld [vmem:[%s1 + $0x218] sm:$0xff]
      %v271 = vld [vmem:[%s1 + $0x220] sm:$0xff]
      %v272 = vld [vmem:[%s1 + $0x228] sm:$0xff]
      %v273 = vld [vmem:[%s1 + $0x230] sm:$0xff]
      %v274 = vld [vmem:[%s1 + $0x238] sm:$0xff]
      %v275 = vld [vmem:[%s1 + $0x240] sm:$0xff]
      %v276 = vld [vmem:[%s1 + $0x248] sm:$0xff]
      %v277 = vld [vmem:[%s1 + $0x250] sm:$0xff]
      %v278 = vld [vmem:[%s1 + $0x258] sm:$0xff]
      %v279 = vld [vmem:[%s1 + $0x260] sm:$0xff]
      %v280 = vld [vmem:[%s1 + $0x268] sm:$0xff]
      %v281 = vld [vmem:[%s1 + $0x270] sm:$0xff]
      %v282 = vld [vmem:[%s1 + $0x278] sm:$0xff]
      %v283 = vld [vmem:[%s1 + $0x280] sm:$0xff]
      %v284 = vld [vmem:[%s1 + $0x288] sm:$0xff]
      %v285 = vld [vmem:[%s1 + $0x290] sm:$0xff]
      %v286 = vld [vmem:[%s1 + $0x298] sm:$0xff]
      %v287 = vld [vmem:[%s1 + $0x2a0] sm:$0xff]
      %v288 = vld [vmem:[%s1 + $0x2a8] sm:$0xff]
      %v289 = vld [vmem:[%s1 + $0x2b0] sm:$0xff]
      %v290 = vld [vmem:[%s1 + $0x2b8] sm:$0xff]
      %v291 = vld [vmem:[%s1 + $0x2c0] sm:$0xff]
      %v292 = vld [vmem:[%s1 + $0x2c8] sm:$0xff]
      %v293 = vld [vmem:[%s1 + $0x2d0] sm:$0xff]
      %v294 = vld [vmem:[%s1 + $0x2d8] sm:$0xff]
      %v295 = vld [vmem:[%s1 + $0x2e0] sm:$0xff]
      %v296 = vld [vmem:[%s1 + $0x2e8] sm:$0xff]
      %v297 = vld [vmem:[%s1 + $0x2f0] sm:$0xff]
      %v298 = vld [vmem:[%s1 + $0x2f8] sm:$0xff]
      %v299 = vld [vmem:[%s1 + $0x300] sm:$0xff]
      %v300 = vld [vmem:[%s1 + $0x308] sm:$0xff]
      %v301 = vld [vmem:[%s1 + $0x310] sm:$0xff]
      %v302 = vld [vmem:[%s1 + $0x318] sm:$0xff]
      %v303 = vld [vmem:[%s1 + $0x320] sm:$0xff]
      %v304 = vld [vmem:[%s1 + $0x328] sm:$0xff]
      %v305 = vld [vmem:[%s1 + $0x330] sm:$0xff]
      %v306 = vld [vmem:[%s1 + $0x338] sm:$0xff]
      %v307 = vld [vmem:[%s1 + $0x340] sm:$0xff]
      %v308 = vld [vmem:[%s1 + $0x348] sm:$0xff]
      %v309 = vld [vmem:[%s1 + $0x350] sm:$0xff]
      %v310 = vld [vmem:[%s1 + $0x358] sm:$0xff]
      %v311 = vld [vmem:[%s1 + $0x360] sm:$0xff]
      %v312 = vld [vmem:[%s1 + $0x368] sm:$0xff]
      %v313 = vld [vmem:[%s1 + $0x370] sm:$0xff]
      %v314 = vld [vmem:[%s1 + $0x378] sm:$0xff]
      %v315 = vld [vmem:[%s1 + $0x380] sm:$0xff]
      %v316 = vld [vmem:[%s1 + $0x388] sm:$0xff]
      %v317 = vld [vmem:[%s1 + $0x390] sm:$0xff]
      %v318 = vld [vmem:[%s1 + $0x398] sm:$0xff]
      %v319 = vld [vmem:[%s1 + $0x3a0] sm:$0xff]
      %v320 = vld [vmem:[%s1 + $0x3a8] sm:$0xff]
      %v321 = vld [vmem:[%s1 + $0x3b0] sm:$0xff]
      %v322 = vld [vmem:[%s1 + $0x3b8] sm:$0xff]
      %v323 = vld [vmem:[%s1 + $0x3c0] sm:$0xff]
      %v324 = vld [vmem:[%s1 + $0x3c8] sm:$0xff]
      %v325 = vld [vmem:[%s1 + $0x3d0] sm:$0xff]
      %v326 = vld [vmem:[%s1 + $0x3d8] sm:$0xff]
      %v327 = vld [vmem:[%s1 + $0x3e0] sm:$0xff]
      %v328 = vld [vmem:[%s1 + $0x3e8] sm:$0xff]
      %v329 = vld [vmem:[%s1 + $0x3f0] sm:$0xff]
      %v330 = vld [vmem:[%s1 + $0x3f8] sm:$0xff]
      %v331 = vld [vmem:[%s2] sm:$0x3]
      %v333 = vlaneseq
      %v334 = vshrl.u32 %v333, 7
      %v335 = vsub.s32 0, %v334
      %v336 = vrot.slane %v331, %v335
      %v337 = vlaneseq
      %v338 = vshrl.u32 %v337, 7
      %v339 = vsub.s32 1, %v338
      %v340 = vrot.slane %v331, %v339
      %v367 = vunpack.c.l.b16 %v179
      %v368 = vunpack.c.h.b16 %v179
      %v369 = vunpack.c.l.b16 %v180
      %v370 = vunpack.c.h.b16 %v180
      %v371 = vunpack.c.l.b16 %v181
      %v372 = vunpack.c.h.b16 %v181
      %v373 = vunpack.c.l.b16 %v182
      %v374 = vunpack.c.h.b16 %v182
      %v375 = vunpack.c.l.b16 %v183
      %v376 = vunpack.c.h.b16 %v183
      %v377 = vunpack.c.l.b16 %v184
      %v378 = vunpack.c.h.b16 %v184
      %v379 = vunpack.c.l.b16 %v185
      %v380 = vunpack.c.h.b16 %v185
      %v381 = vunpack.c.l.b16 %v186
      %v382 = vunpack.c.h.b16 %v186
      %v383 = vunpack.c.l.b16 %v187
      %v384 = vunpack.c.h.b16 %v187
      %v385 = vunpack.c.l.b16 %v188
      %v386 = vunpack.c.h.b16 %v188
      %v387 = vunpack.c.l.b16 %v189
      %v388 = vunpack.c.h.b16 %v189
      %v389 = vunpack.c.l.b16 %v190
      %v390 = vunpack.c.h.b16 %v190
      %v391 = vunpack.c.l.b16 %v191
      %v392 = vunpack.c.h.b16 %v191
      %v393 = vunpack.c.l.b16 %v192
      %v394 = vunpack.c.h.b16 %v192
      %v395 = vunpack.c.l.b16 %v193
      %v396 = vunpack.c.h.b16 %v193
      %v397 = vunpack.c.l.b16 %v194
      %v398 = vunpack.c.h.b16 %v194
      %v399 = vunpack.c.l.b16 %v195
      %v400 = vunpack.c.h.b16 %v195
      %v401 = vunpack.c.l.b16 %v196
      %v402 = vunpack.c.h.b16 %v196
      %v403 = vunpack.c.l.b16 %v197
      %v404 = vunpack.c.h.b16 %v197
      %v405 = vunpack.c.l.b16 %v198
      %v406 = vunpack.c.h.b16 %v198
      %v407 = vunpack.c.l.b16 %v199
      %v408 = vunpack.c.h.b16 %v199
      %v409 = vunpack.c.l.b16 %v200
      %v410 = vunpack.c.h.b16 %v200
      %v411 = vunpack.c.l.b16 %v201
      %v412 = vunpack.c.h.b16 %v201
      %v413 = vunpack.c.l.b16 %v202
      %v414 = vunpack.c.h.b16 %v202
      %v415 = vpack.c.b16 %v375, %v367
      %v416 = vpack.c.b16 %v376, %v368
      %v417 = vpack.c.b16 %v377, %v369
      %v418 = vpack.c.b16 %v378, %v370
      %v419 = vpack.c.b16 %v379, %v371
      %v420 = vpack.c.b16 %v380, %v372
      %v421 = vpack.c.b16 %v381, %v373
      %v422 = vpack.c.b16 %v382, %v374
      %v423 = vpack.c.b16 %v391, %v383
      %v424 = vpack.c.b16 %v392, %v384
      %v425 = vpack.c.b16 %v393, %v385
      %v426 = vpack.c.b16 %v394, %v386
      %v427 = vpack.c.b16 %v395, %v387
      %v428 = vpack.c.b16 %v396, %v388
      %v429 = vpack.c.b16 %v397, %v389
      %v430 = vpack.c.b16 %v398, %v390
      %v431 = vpack.c.b16 %v407, %v399
      %v432 = vpack.c.b16 %v408, %v400
      %v433 = vpack.c.b16 %v409, %v401
      %v434 = vpack.c.b16 %v410, %v402
      %v435 = vpack.c.b16 %v411, %v403
      %v436 = vpack.c.b16 %v412, %v404
      %v437 = vpack.c.b16 %v413, %v405
      %v438 = vpack.c.b16 %v414, %v406
      %v591 = vunpack.c.l.b16 %v203
      %v592 = vunpack.c.h.b16 %v203
      %v593 = vunpack.c.l.b16 %v204
      %v594 = vunpack.c.h.b16 %v204
      %v595 = vunpack.c.l.b16 %v205
      %v596 = vunpack.c.h.b16 %v205
      %v597 = vunpack.c.l.b16 %v206
      %v598 = vunpack.c.h.b16 %v206
      %v599 = vunpack.c.l.b16 %v207
      %v600 = vunpack.c.h.b16 %v207
      %v601 = vunpack.c.l.b16 %v208
      %v602 = vunpack.c.h.b16 %v208
      %v603 = vunpack.c.l.b16 %v209
      %v604 = vunpack.c.h.b16 %v209
      %v605 = vunpack.c.l.b16 %v210
      %v606 = vunpack.c.h.b16 %v210
      %v607 = vunpack.c.l.b16 %v211
      %v608 = vunpack.c.h.b16 %v211
      %v609 = vunpack.c.l.b16 %v212
      %v610 = vunpack.c.h.b16 %v212
      %v611 = vunpack.c.l.b16 %v213
      %v612 = vunpack.c.h.b16 %v213
      %v613 = vunpack.c.l.b16 %v214
      %v614 = vunpack.c.h.b16 %v214
      %v615 = vunpack.c.l.b16 %v215
      %v616 = vunpack.c.h.b16 %v215
      %v617 = vunpack.c.l.b16 %v216
      %v618 = vunpack.c.h.b16 %v216
      %v619 = vunpack.c.l.b16 %v217
      %v620 = vunpack.c.h.b16 %v217
      %v621 = vunpack.c.l.b16 %v218
      %v622 = vunpack.c.h.b16 %v218
      %v623 = vunpack.c.l.b16 %v219
      %v624 = vunpack.c.h.b16 %v219
      %v625 = vunpack.c.l.b16 %v220
      %v626 = vunpack.c.h.b16 %v220
      %v627 = vunpack.c.l.b16 %v221
      %v628 = vunpack.c.h.b16 %v221
      %v629 = vunpack.c.l.b16 %v222
      %v630 = vunpack.c.h.b16 %v222
      %v631 = vunpack.c.l.b16 %v223
      %v632 = vunpack.c.h.b16 %v223
      %v633 = vunpack.c.l.b16 %v224
      %v634 = vunpack.c.h.b16 %v224
      %v635 = vunpack.c.l.b16 %v225
      %v636 = vunpack.c.h.b16 %v225
      %v637 = vunpack.c.l.b16 %v226
      %v638 = vunpack.c.h.b16 %v226
      %v639 = vunpack.c.l.b16 %v227
      %v640 = vunpack.c.h.b16 %v227
      %v641 = vunpack.c.l.b16 %v228
      %v642 = vunpack.c.h.b16 %v228
      %v643 = vunpack.c.l.b16 %v229
      %v644 = vunpack.c.h.b16 %v229
      %v645 = vunpack.c.l.b16 %v230
      %v646 = vunpack.c.h.b16 %v230
      %v647 = vunpack.c.l.b16 %v231
      %v648 = vunpack.c.h.b16 %v231
      %v649 = vunpack.c.l.b16 %v232
      %v650 = vunpack.c.h.b16 %v232
      %v651 = vunpack.c.l.b16 %v233
      %v652 = vunpack.c.h.b16 %v233
      %v653 = vunpack.c.l.b16 %v234
      %v654 = vunpack.c.h.b16 %v234
      %v655 = vunpack.c.l.b16 %v235
      %v656 = vunpack.c.h.b16 %v235
      %v657 = vunpack.c.l.b16 %v236
      %v658 = vunpack.c.h.b16 %v236
      %v659 = vunpack.c.l.b16 %v237
      %v660 = vunpack.c.h.b16 %v237
      %v661 = vunpack.c.l.b16 %v238
      %v662 = vunpack.c.h.b16 %v238
      %v663 = vunpack.c.l.b16 %v239
      %v664 = vunpack.c.h.b16 %v239
      %v665 = vunpack.c.l.b16 %v240
      %v666 = vunpack.c.h.b16 %v240
      %v667 = vunpack.c.l.b16 %v241
      %v668 = vunpack.c.h.b16 %v241
      %v669 = vunpack.c.l.b16 %v242
      %v670 = vunpack.c.h.b16 %v242
      %v671 = vunpack.c.l.b16 %v243
      %v672 = vunpack.c.h.b16 %v243
      %v673 = vunpack.c.l.b16 %v244
      %v674 = vunpack.c.h.b16 %v244
      %v675 = vunpack.c.l.b16 %v245
      %v676 = vunpack.c.h.b16 %v245
      %v677 = vunpack.c.l.b16 %v246
      %v678 = vunpack.c.h.b16 %v246
      %v679 = vunpack.c.l.b16 %v247
      %v680 = vunpack.c.h.b16 %v247
      %v681 = vunpack.c.l.b16 %v248
      %v682 = vunpack.c.h.b16 %v248
      %v683 = vunpack.c.l.b16 %v249
      %v684 = vunpack.c.h.b16 %v249
      %v685 = vunpack.c.l.b16 %v250
      %v686 = vunpack.c.h.b16 %v250
      %v687 = vunpack.c.l.b16 %v251
      %v688 = vunpack.c.h.b16 %v251
      %v689 = vunpack.c.l.b16 %v252
      %v690 = vunpack.c.h.b16 %v252
      %v691 = vunpack.c.l.b16 %v253
      %v692 = vunpack.c.h.b16 %v253
      %v693 = vunpack.c.l.b16 %v254
      %v694 = vunpack.c.h.b16 %v254
      %v695 = vunpack.c.l.b16 %v255
      %v696 = vunpack.c.h.b16 %v255
      %v697 = vunpack.c.l.b16 %v256
      %v698 = vunpack.c.h.b16 %v256
      %v699 = vunpack.c.l.b16 %v257
      %v700 = vunpack.c.h.b16 %v257
      %v701 = vunpack.c.l.b16 %v258
      %v702 = vunpack.c.h.b16 %v258
      %v703 = vunpack.c.l.b16 %v259
      %v704 = vunpack.c.h.b16 %v259
      %v705 = vunpack.c.l.b16 %v260
      %v706 = vunpack.c.h.b16 %v260
      %v707 = vunpack.c.l.b16 %v261
      %v708 = vunpack.c.h.b16 %v261
      %v709 = vunpack.c.l.b16 %v262
      %v710 = vunpack.c.h.b16 %v262
      %v711 = vunpack.c.l.b16 %v263
      %v712 = vunpack.c.h.b16 %v263
      %v713 = vunpack.c.l.b16 %v264
      %v714 = vunpack.c.h.b16 %v264
      %v715 = vunpack.c.l.b16 %v265
      %v716 = vunpack.c.h.b16 %v265
      %v717 = vunpack.c.l.b16 %v266
      %v718 = vunpack.c.h.b16 %v266
      %v719 = vunpack.c.l.b16 %v267
      %v720 = vunpack.c.h.b16 %v267
      %v721 = vunpack.c.l.b16 %v268
      %v722 = vunpack.c.h.b16 %v268
      %v723 = vunpack.c.l.b16 %v269
      %v724 = vunpack.c.h.b16 %v269
      %v725 = vunpack.c.l.b16 %v270
      %v726 = vunpack.c.h.b16 %v270
      %v727 = vunpack.c.l.b16 %v271
      %v728 = vunpack.c.h.b16 %v271
      %v729 = vunpack.c.l.b16 %v272
      %v730 = vunpack.c.h.b16 %v272
      %v731 = vunpack.c.l.b16 %v273
      %v732 = vunpack.c.h.b16 %v273
      %v733 = vunpack.c.l.b16 %v274
      %v734 = vunpack.c.h.b16 %v274
      %v735 = vunpack.c.l.b16 %v275
      %v736 = vunpack.c.h.b16 %v275
      %v737 = vunpack.c.l.b16 %v276
      %v738 = vunpack.c.h.b16 %v276
      %v739 = vunpack.c.l.b16 %v277
      %v740 = vunpack.c.h.b16 %v277
      %v741 = vunpack.c.l.b16 %v278
      %v742 = vunpack.c.h.b16 %v278
      %v743 = vunpack.c.l.b16 %v279
      %v744 = vunpack.c.h.b16 %v279
      %v745 = vunpack.c.l.b16 %v280
      %v746 = vunpack.c.h.b16 %v280
      %v747 = vunpack.c.l.b16 %v281
      %v748 = vunpack.c.h.b16 %v281
      %v749 = vunpack.c.l.b16 %v282
      %v750 = vunpack.c.h.b16 %v282
      %v751 = vunpack.c.l.b16 %v283
      %v752 = vunpack.c.h.b16 %v283
      %v753 = vunpack.c.l.b16 %v284
      %v754 = vunpack.c.h.b16 %v284
      %v755 = vunpack.c.l.b16 %v285
      %v756 = vunpack.c.h.b16 %v285
      %v757 = vunpack.c.l.b16 %v286
      %v758 = vunpack.c.h.b16 %v286
      %v759 = vunpack.c.l.b16 %v287
      %v760 = vunpack.c.h.b16 %v287
      %v761 = vunpack.c.l.b16 %v288
      %v762 = vunpack.c.h.b16 %v288
      %v763 = vunpack.c.l.b16 %v289
      %v764 = vunpack.c.h.b16 %v289
      %v765 = vunpack.c.l.b16 %v290
      %v766 = vunpack.c.h.b16 %v290
      %v767 = vunpack.c.l.b16 %v291
      %v768 = vunpack.c.h.b16 %v291
      %v769 = vunpack.c.l.b16 %v292
      %v770 = vunpack.c.h.b16 %v292
      %v771 = vunpack.c.l.b16 %v293
      %v772 = vunpack.c.h.b16 %v293
      %v773 = vunpack.c.l.b16 %v294
      %v774 = vunpack.c.h.b16 %v294
      %v775 = vunpack.c.l.b16 %v295
      %v776 = vunpack.c.h.b16 %v295
      %v777 = vunpack.c.l.b16 %v296
      %v778 = vunpack.c.h.b16 %v296
      %v779 = vunpack.c.l.b16 %v297
      %v780 = vunpack.c.h.b16 %v297
      %v781 = vunpack.c.l.b16 %v298
      %v782 = vunpack.c.h.b16 %v298
      %v783 = vunpack.c.l.b16 %v299
      %v784 = vunpack.c.h.b16 %v299
      %v785 = vunpack.c.l.b16 %v300
      %v786 = vunpack.c.h.b16 %v300
      %v787 = vunpack.c.l.b16 %v301
      %v788 = vunpack.c.h.b16 %v301
      %v789 = vunpack.c.l.b16 %v302
      %v790 = vunpack.c.h.b16 %v302
      %v791 = vunpack.c.l.b16 %v303
      %v792 = vunpack.c.h.b16 %v303
      %v793 = vunpack.c.l.b16 %v304
      %v794 = vunpack.c.h.b16 %v304
      %v795 = vunpack.c.l.b16 %v305
      %v796 = vunpack.c.h.b16 %v305
      %v797 = vunpack.c.l.b16 %v306
      %v798 = vunpack.c.h.b16 %v306
      %v799 = vunpack.c.l.b16 %v307
      %v800 = vunpack.c.h.b16 %v307
      %v801 = vunpack.c.l.b16 %v308
      %v802 = vunpack.c.h.b16 %v308
      %v803 = vunpack.c.l.b16 %v309
      %v804 = vunpack.c.h.b16 %v309
      %v805 = vunpack.c.l.b16 %v310
      %v806 = vunpack.c.h.b16 %v310
      %v807 = vunpack.c.l.b16 %v311
      %v808 = vunpack.c.h.b16 %v311
      %v809 = vunpack.c.l.b16 %v312
      %v810 = vunpack.c.h.b16 %v312
      %v811 = vunpack.c.l.b16 %v313
      %v812 = vunpack.c.h.b16 %v313
      %v813 = vunpack.c.l.b16 %v314
      %v814 = vunpack.c.h.b16 %v314
      %v815 = vunpack.c.l.b16 %v315
      %v816 = vunpack.c.h.b16 %v315
      %v817 = vunpack.c.l.b16 %v316
      %v818 = vunpack.c.h.b16 %v316
      %v819 = vunpack.c.l.b16 %v317
      %v820 = vunpack.c.h.b16 %v317
      %v821 = vunpack.c.l.b16 %v318
      %v822 = vunpack.c.h.b16 %v318
      %v823 = vunpack.c.l.b16 %v319
      %v824 = vunpack.c.h.b16 %v319
      %v825 = vunpack.c.l.b16 %v320
      %v826 = vunpack.c.h.b16 %v320
      %v827 = vunpack.c.l.b16 %v321
      %v828 = vunpack.c.h.b16 %v321
      %v829 = vunpack.c.l.b16 %v322
      %v830 = vunpack.c.h.b16 %v322
      %v831 = vunpack.c.l.b16 %v323
      %v832 = vunpack.c.h.b16 %v323
      %v833 = vunpack.c.l.b16 %v324
      %v834 = vunpack.c.h.b16 %v324
      %v835 = vunpack.c.l.b16 %v325
      %v836 = vunpack.c.h.b16 %v325
      %v837 = vunpack.c.l.b16 %v326
      %v838 = vunpack.c.h.b16 %v326
      %v839 = vunpack.c.l.b16 %v327
      %v840 = vunpack.c.h.b16 %v327
      %v841 = vunpack.c.l.b16 %v328
      %v842 = vunpack.c.h.b16 %v328
      %v843 = vunpack.c.l.b16 %v329
      %v844 = vunpack.c.h.b16 %v329
      %v845 = vunpack.c.l.b16 %v330
      %v846 = vunpack.c.h.b16 %v330
      %v847 = vpack.c.b16 %v593, %v591
      %v848 = vpack.c.b16 %v594, %v592
      %v849 = vpack.c.b16 %v597, %v595
      %v850 = vpack.c.b16 %v598, %v596
      %v851 = vpack.c.b16 %v601, %v599
      %v852 = vpack.c.b16 %v602, %v600
      %v853 = vpack.c.b16 %v605, %v603
      %v854 = vpack.c.b16 %v606, %v604
      %v855 = vpack.c.b16 %v609, %v607
      %v856 = vpack.c.b16 %v610, %v608
      %v857 = vpack.c.b16 %v613, %v611
      %v858 = vpack.c.b16 %v614, %v612
      %v859 = vpack.c.b16 %v617, %v615
      %v860 = vpack.c.b16 %v618, %v616
      %v861 = vpack.c.b16 %v621, %v619
      %v862 = vpack.c.b16 %v622, %v620
      %v863 = vpack.c.b16 %v625, %v623
      %v864 = vpack.c.b16 %v626, %v624
      %v865 = vpack.c.b16 %v629, %v627
      %v866 = vpack.c.b16 %v630, %v628
      %v867 = vpack.c.b16 %v633, %v631
      %v868 = vpack.c.b16 %v634, %v632
      %v869 = vpack.c.b16 %v637, %v635
      %v870 = vpack.c.b16 %v638, %v636
      %v871 = vpack.c.b16 %v641, %v639
      %v872 = vpack.c.b16 %v642, %v640
      %v873 = vpack.c.b16 %v645, %v643
      %v874 = vpack.c.b16 %v646, %v644
      %v875 = vpack.c.b16 %v649, %v647
      %v876 = vpack.c.b16 %v650, %v648
      %v877 = vpack.c.b16 %v653, %v651
      %v878 = vpack.c.b16 %v654, %v652
      %v879 = vpack.c.b16 %v657, %v655
      %v880 = vpack.c.b16 %v658, %v656
      %v881 = vpack.c.b16 %v661, %v659
      %v882 = vpack.c.b16 %v662, %v660
      %v883 = vpack.c.b16 %v665, %v663
      %v884 = vpack.c.b16 %v666, %v664
      %v885 = vpack.c.b16 %v669, %v667
      %v886 = vpack.c.b16 %v670, %v668
      %v887 = vpack.c.b16 %v673, %v671
      %v888 = vpack.c.b16 %v674, %v672
      %v889 = vpack.c.b16 %v677, %v675
      %v890 = vpack.c.b16 %v678, %v676
      %v891 = vpack.c.b16 %v681, %v679
      %v892 = vpack.c.b16 %v682, %v680
      %v893 = vpack.c.b16 %v685, %v683
      %v894 = vpack.c.b16 %v686, %v684
      %v895 = vpack.c.b16 %v689, %v687
      %v896 = vpack.c.b16 %v690, %v688
      %v897 = vpack.c.b16 %v693, %v691
      %v898 = vpack.c.b16 %v694, %v692
      %v899 = vpack.c.b16 %v697, %v695
      %v900 = vpack.c.b16 %v698, %v696
      %v901 = vpack.c.b16 %v701, %v699
      %v902 = vpack.c.b16 %v702, %v700
      %v903 = vpack.c.b16 %v705, %v703
      %v904 = vpack.c.b16 %v706, %v704
      %v905 = vpack.c.b16 %v709, %v707
      %v906 = vpack.c.b16 %v710, %v708
      %v907 = vpack.c.b16 %v713, %v711
      %v908 = vpack.c.b16 %v714, %v712
      %v909 = vpack.c.b16 %v717, %v715
      %v910 = vpack.c.b16 %v718, %v716
      %v911 = vpack.c.b16 %v721, %v719
      %v912 = vpack.c.b16 %v722, %v720
      %v913 = vpack.c.b16 %v725, %v723
      %v914 = vpack.c.b16 %v726, %v724
      %v915 = vpack.c.b16 %v729, %v727
      %v916 = vpack.c.b16 %v730, %v728
      %v917 = vpack.c.b16 %v733, %v731
      %v918 = vpack.c.b16 %v734, %v732
      %v919 = vpack.c.b16 %v737, %v735
      %v920 = vpack.c.b16 %v738, %v736
      %v921 = vpack.c.b16 %v741, %v739
      %v922 = vpack.c.b16 %v742, %v740
      %v923 = vpack.c.b16 %v745, %v743
      %v924 = vpack.c.b16 %v746, %v744
      %v925 = vpack.c.b16 %v749, %v747
      %v926 = vpack.c.b16 %v750, %v748
      %v927 = vpack.c.b16 %v753, %v751
      %v928 = vpack.c.b16 %v754, %v752
      %v929 = vpack.c.b16 %v757, %v755
      %v930 = vpack.c.b16 %v758, %v756
      %v931 = vpack.c.b16 %v761, %v759
      %v932 = vpack.c.b16 %v762, %v760
      %v933 = vpack.c.b16 %v765, %v763
      %v934 = vpack.c.b16 %v766, %v764
      %v935 = vpack.c.b16 %v769, %v767
      %v936 = vpack.c.b16 %v770, %v768
      %v937 = vpack.c.b16 %v773, %v771
      %v938 = vpack.c.b16 %v774, %v772
      %v939 = vpack.c.b16 %v777, %v775
      %v940 = vpack.c.b16 %v778, %v776
      %v941 = vpack.c.b16 %v781, %v779
      %v942 = vpack.c.b16 %v782, %v780
      %v943 = vpack.c.b16 %v785, %v783
      %v944 = vpack.c.b16 %v786, %v784
      %v945 = vpack.c.b16 %v789, %v787
      %v946 = vpack.c.b16 %v790, %v788
      %v947 = vpack.c.b16 %v793, %v791
      %v948 = vpack.c.b16 %v794, %v792
      %v949 = vpack.c.b16 %v797, %v795
      %v950 = vpack.c.b16 %v798, %v796
      %v951 = vpack.c.b16 %v801, %v799
      %v952 = vpack.c.b16 %v802, %v800
      %v953 = vpack.c.b16 %v805, %v803
      %v954 = vpack.c.b16 %v806, %v804
      %v955 = vpack.c.b16 %v809, %v807
      %v956 = vpack.c.b16 %v810, %v808
      %v957 = vpack.c.b16 %v813, %v811
      %v958 = vpack.c.b16 %v814, %v812
      %v959 = vpack.c.b16 %v817, %v815
      %v960 = vpack.c.b16 %v818, %v816
      %v961 = vpack.c.b16 %v821, %v819
      %v962 = vpack.c.b16 %v822, %v820
      %v963 = vpack.c.b16 %v825, %v823
      %v964 = vpack.c.b16 %v826, %v824
      %v965 = vpack.c.b16 %v829, %v827
      %v966 = vpack.c.b16 %v830, %v828
      %v967 = vpack.c.b16 %v833, %v831
      %v968 = vpack.c.b16 %v834, %v832
      %v969 = vpack.c.b16 %v837, %v835
      %v970 = vpack.c.b16 %v838, %v836
      %v971 = vpack.c.b16 %v841, %v839
      %v972 = vpack.c.b16 %v842, %v840
      %v973 = vpack.c.b16 %v845, %v843
      %v974 = vpack.c.b16 %v846, %v844
      %1103 = vmatprep.subr.bf16.mxu0 %v848
      %1104 = vmatpush1.bf16.msra.mxu0 %v847
      %1105 = vmatprep.subr.bf16.mxu0 %v850
      %1106 = vmatpush1.bf16.msra.mxu0 %v849
      %1107 = vmatprep.subr.bf16.mxu0 %v852
      %1108 = vmatpush1.bf16.msra.mxu0 %v851
      %1109 = vmatprep.subr.bf16.mxu0 %v854
      %1110 = vmatpush1.bf16.msra.mxu0 %v853
      %1111 = vmatprep.subr.bf16.mxu0 %v856
      %1112 = vmatpush1.bf16.msra.mxu0 %v855
      %1113 = vmatprep.subr.bf16.mxu0 %v858
      %1114 = vmatpush1.bf16.msra.mxu0 %v857
      %1115 = vmatprep.subr.bf16.mxu0 %v860
      %1116 = vmatpush1.bf16.msra.mxu0 %v859
      %1117 = vmatprep.subr.bf16.mxu0 %v862
      %1118 = vmatpush1.bf16.msra.mxu0 %v861
      %1119 = vmatprep.subr.bf16.mxu0 %v864
      %1120 = vmatpush1.bf16.msra.mxu0 %v863
      %1121 = vmatprep.subr.bf16.mxu0 %v866
      %1122 = vmatpush1.bf16.msra.mxu0 %v865
      %1123 = vmatprep.subr.bf16.mxu0 %v868
      %1124 = vmatpush1.bf16.msra.mxu0 %v867
      %1125 = vmatprep.subr.bf16.mxu0 %v870
      %1126 = vmatpush1.bf16.msra.mxu0 %v869
      %1127 = vmatprep.subr.bf16.mxu0 %v872
      %1128 = vmatpush1.bf16.msra.mxu0 %v871
      %1129 = vmatprep.subr.bf16.mxu0 %v874
      %1130 = vmatpush1.bf16.msra.mxu0 %v873
      %1131 = vmatprep.subr.bf16.mxu0 %v876
      %1132 = vmatpush1.bf16.msra.mxu0 %v875
      %1133 = vmatprep.subr.bf16.mxu0 %v878
      %1134 = vmatpush1.bf16.msra.mxu0 %v877
      %1135 = vmatprep.mubr.bf16.mxu0 %v416
      %1136 = vmatmul.mubr.bf16.gmra.mrb[0].mxu0 %v415
      %v1137 = vpop.f32.mrb[0].mxu0
      %v1138 = vadd.f32 %v336, %v1137
      %v1139 = vpop.f32.mrb[0].mxu0
      %v1140 = vadd.f32 %v340, %v1139
      %v1141 = vpop.f32.mrb[0].mxu0
      %v1142 = vadd.f32 %v336, %v1141
      %v1143 = vpop.f32.mrb[0].mxu0
      %v1144 = vadd.f32 %v340, %v1143
      %1145 = vmatprep.mubr.bf16.mxu0 %v424
      %1146 = vmatmul.mubr.bf16.gmra.mrb[0].mxu0 %v423
      %v1147 = vpop.f32.mrb[0].mxu0
      %v1148 = vadd.f32 %v336, %v1147
      %v1149 = vpop.f32.mrb[0].mxu0
      %v1150 = vadd.f32 %v340, %v1149
      %v1151 = vpop.f32.mrb[0].mxu0
      %v1152 = vadd.f32 %v336, %v1151
      %v1153 = vpop.f32.mrb[0].mxu0
      %v1154 = vadd.f32 %v340, %v1153
      %1155 = vmatprep.mubr.bf16.mxu0 %v432
      %1156 = vmatmul.mubr.bf16.gmra.mrb[0].mxu0 %v431
      %v1157 = vpop.f32.mrb[0].mxu0
      %v1158 = vadd.f32 %v336, %v1157
      %v1159 = vpop.f32.mrb[0].mxu0
      %v1160 = vadd.f32 %v340, %v1159
      %v1161 = vpop.f32.mrb[0].mxu0
      %v1162 = vadd.f32 %v336, %v1161
      %v1163 = vpop.f32.mrb[0].mxu0
      %v1164 = vadd.f32 %v340, %v1163
      %1165 = vdwg.mxu0
      %1166 = vmatprep.subr.bf16.mxu0 %v880
      %1167 = vmatpush1.bf16.msra.mxu0 %v879
      %1168 = vmatprep.subr.bf16.mxu0 %v882
      %1169 = vmatpush1.bf16.msra.mxu0 %v881
      %1170 = vmatprep.subr.bf16.mxu0 %v884
      %1171 = vmatpush1.bf16.msra.mxu0 %v883
      %1172 = vmatprep.subr.bf16.mxu0 %v886
      %1173 = vmatpush1.bf16.msra.mxu0 %v885
      %1174 = vmatprep.subr.bf16.mxu0 %v888
      %1175 = vmatpush1.bf16.msra.mxu0 %v887
      %1176 = vmatprep.subr.bf16.mxu0 %v890
      %1177 = vmatpush1.bf16.msra.mxu0 %v889
      %1178 = vmatprep.subr.bf16.mxu0 %v892
      %1179 = vmatpush1.bf16.msra.mxu0 %v891
      %1180 = vmatprep.subr.bf16.mxu0 %v894
      %1181 = vmatpush1.bf16.msra.mxu0 %v893
      %1182 = vmatprep.subr.bf16.mxu0 %v896
      %1183 = vmatpush1.bf16.msra.mxu0 %v895
      %1184 = vmatprep.subr.bf16.mxu0 %v898
      %1185 = vmatpush1.bf16.msra.mxu0 %v897
      %1186 = vmatprep.subr.bf16.mxu0 %v900
      %1187 = vmatpush1.bf16.msra.mxu0 %v899
      %1188 = vmatprep.subr.bf16.mxu0 %v902
      %1189 = vmatpush1.bf16.msra.mxu0 %v901
      %1190 = vmatprep.subr.bf16.mxu0 %v904
      %1191 = vmatpush1.bf16.msra.mxu0 %v903
      %1192 = vmatprep.subr.bf16.mxu0 %v906
      %1193 = vmatpush1.bf16.msra.mxu0 %v905
      %1194 = vmatprep.subr.bf16.mxu0 %v908
      %1195 = vmatpush1.bf16.msra.mxu0 %v907
      %1196 = vmatprep.subr.bf16.mxu0 %v910
      %1197 = vmatpush1.bf16.msra.mxu0 %v909
      %1198 = vmatprep.mubr.bf16.mxu0 %v418
      %1199 = vmatmul.mubr.bf16.gmra.mrb[0].mxu0 %v417
      %v1200 = vpop.f32.mrb[0].mxu0
      %v1201 = vadd.f32 %v1138, %v1200
      %v1202 = vpop.f32.mrb[0].mxu0
      %v1203 = vadd.f32 %v1140, %v1202
      %v1204 = vpop.f32.mrb[0].mxu0
      %v1205 = vadd.f32 %v1142, %v1204
      %v1206 = vpop.f32.mrb[0].mxu0
      %v1207 = vadd.f32 %v1144, %v1206
      %1208 = vmatprep.mubr.bf16.mxu0 %v426
      %1209 = vmatmul.mubr.bf16.gmra.mrb[0].mxu0 %v425
      %v1210 = vpop.f32.mrb[0].mxu0
      %v1211 = vadd.f32 %v1148, %v1210
      %v1212 = vpop.f32.mrb[0].mxu0
      %v1213 = vadd.f32 %v1150, %v1212
      %v1214 = vpop.f32.mrb[0].mxu0
      %v1215 = vadd.f32 %v1152, %v1214
      %v1216 = vpop.f32.mrb[0].mxu0
      %v1217 = vadd.f32 %v1154, %v1216
      %1218 = vmatprep.mubr.bf16.mxu0 %v434
      %1219 = vmatmul.mubr.bf16.gmra.mrb[0].mxu0 %v433
      %v1220 = vpop.f32.mrb[0].mxu0
      %v1221 = vadd.f32 %v1158, %v1220
      %v1222 = vpop.f32.mrb[0].mxu0
      %v1223 = vadd.f32 %v1160, %v1222
      %v1224 = vpop.f32.mrb[0].mxu0
      %v1225 = vadd.f32 %v1162, %v1224
      %v1226 = vpop.f32.mrb[0].mxu0
      %v1227 = vadd.f32 %v1164, %v1226
      %1228 = vdwg.mxu0
      %1229 = vmatprep.subr.bf16.mxu0 %v912
      %1230 = vmatpush1.bf16.msra.mxu0 %v911
      %1231 = vmatprep.subr.bf16.mxu0 %v914
      %1232 = vmatpush1.bf16.msra.mxu0 %v913
      %1233 = vmatprep.subr.bf16.mxu0 %v916
      %1234 = vmatpush1.bf16.msra.mxu0 %v915
      %1235 = vmatprep.subr.bf16.mxu0 %v918
      %1236 = vmatpush1.bf16.msra.mxu0 %v917
      %1237 = vmatprep.subr.bf16.mxu0 %v920
      %1238 = vmatpush1.bf16.msra.mxu0 %v919
      %1239 = vmatprep.subr.bf16.mxu0 %v922
      %1240 = vmatpush1.bf16.msra.mxu0 %v921
      %1241 = vmatprep.subr.bf16.mxu0 %v924
      %1242 = vmatpush1.bf16.msra.mxu0 %v923
      %1243 = vmatprep.subr.bf16.mxu0 %v926
      %1244 = vmatpush1.bf16.msra.mxu0 %v925
      %1245 = vmatprep.subr.bf16.mxu0 %v928
      %1246 = vmatpush1.bf16.msra.mxu0 %v927
      %1247 = vmatprep.subr.bf16.mxu0 %v930
      %1248 = vmatpush1.bf16.msra.mxu0 %v929
      %1249 = vmatprep.subr.bf16.mxu0 %v932
      %1250 = vmatpush1.bf16.msra.mxu0 %v931
      %1251 = vmatprep.subr.bf16.mxu0 %v934
      %1252 = vmatpush1.bf16.msra.mxu0 %v933
      %1253 = vmatprep.subr.bf16.mxu0 %v936
      %1254 = vmatpush1.bf16.msra.mxu0 %v935
      %1255 = vmatprep.subr.bf16.mxu0 %v938
      %1256 = vmatpush1.bf16.msra.mxu0 %v937
      %1257 = vmatprep.subr.bf16.mxu0 %v940
      %1258 = vmatpush1.bf16.msra.mxu0 %v939
      %1259 = vmatprep.subr.bf16.mxu0 %v942
      %1260 = vmatpush1.bf16.msra.mxu0 %v941
      %1261 = vmatprep.mubr.bf16.mxu0 %v420
      %1262 = vmatmul.mubr.bf16.gmra.mrb[0].mxu0 %v419
      %v1263 = vpop.f32.mrb[0].mxu0
      %v1264 = vadd.f32 %v1201, %v1263
      %v1265 = vpop.f32.mrb[0].mxu0
      %v1266 = vadd.f32 %v1203, %v1265
      %v1267 = vpop.f32.mrb[0].mxu0
      %v1268 = vadd.f32 %v1205, %v1267
      %v1269 = vpop.f32.mrb[0].mxu0
      %v1270 = vadd.f32 %v1207, %v1269
      %1271 = vmatprep.mubr.bf16.mxu0 %v428
      %1272 = vmatmul.mubr.bf16.gmra.mrb[0].mxu0 %v427
      %v1273 = vpop.f32.mrb[0].mxu0
      %v1274 = vadd.f32 %v1211, %v1273
      %v1275 = vpop.f32.mrb[0].mxu0
      %v1276 = vadd.f32 %v1213, %v1275
      %v1277 = vpop.f32.mrb[0].mxu0
      %v1278 = vadd.f32 %v1215, %v1277
      %v1279 = vpop.f32.mrb[0].mxu0
      %v1280 = vadd.f32 %v1217, %v1279
      %1281 = vmatprep.mubr.bf16.mxu0 %v436
      %1282 = vmatmul.mubr.bf16.gmra.mrb[0].mxu0 %v435
      %v1283 = vpop.f32.mrb[0].mxu0
      %v1284 = vadd.f32 %v1221, %v1283
      %v1285 = vpop.f32.mrb[0].mxu0
      %v1286 = vadd.f32 %v1223, %v1285
      %v1287 = vpop.f32.mrb[0].mxu0
      %v1288 = vadd.f32 %v1225, %v1287
      %v1289 = vpop.f32.mrb[0].mxu0
      %v1290 = vadd.f32 %v1227, %v1289
      %1291 = vdwg.mxu0
      %1292 = vmatprep.subr.bf16.mxu0 %v944
      %1293 = vmatpush1.bf16.msra.mxu0 %v943
      %1294 = vmatprep.subr.bf16.mxu0 %v946
      %1295 = vmatpush1.bf16.msra.mxu0 %v945
      %1296 = vmatprep.subr.bf16.mxu0 %v948
      %1297 = vmatpush1.bf16.msra.mxu0 %v947
      %1298 = vmatprep.subr.bf16.mxu0 %v950
      %1299 = vmatpush1.bf16.msra.mxu0 %v949
      %1300 = vmatprep.subr.bf16.mxu0 %v952
      %1301 = vmatpush1.bf16.msra.mxu0 %v951
      %1302 = vmatprep.subr.bf16.mxu0 %v954
      %1303 = vmatpush1.bf16.msra.mxu0 %v953
      %1304 = vmatprep.subr.bf16.mxu0 %v956
      %1305 = vmatpush1.bf16.msra.mxu0 %v955
      %1306 = vmatprep.subr.bf16.mxu0 %v958
      %1307 = vmatpush1.bf16.msra.mxu0 %v957
      %1308 = vmatprep.subr.bf16.mxu0 %v960
      %1309 = vmatpush1.bf16.msra.mxu0 %v959
      %1310 = vmatprep.subr.bf16.mxu0 %v962
      %1311 = vmatpush1.bf16.msra.mxu0 %v961
      %1312 = vmatprep.subr.bf16.mxu0 %v964
      %1313 = vmatpush1.bf16.msra.mxu0 %v963
      %1314 = vmatprep.subr.bf16.mxu0 %v966
      %1315 = vmatpush1.bf16.msra.mxu0 %v965
      %1316 = vmatprep.subr.bf16.mxu0 %v968
      %1317 = vmatpush1.bf16.msra.mxu0 %v967
      %1318 = vmatprep.subr.bf16.mxu0 %v970
      %1319 = vmatpush1.bf16.msra.mxu0 %v969
      %1320 = vmatprep.subr.bf16.mxu0 %v972
      %1321 = vmatpush1.bf16.msra.mxu0 %v971
      %1322 = vmatprep.subr.bf16.mxu0 %v974
      %1323 = vmatpush1.bf16.msra.mxu0 %v973
      %1324 = vmatprep.mubr.bf16.mxu0 %v422
      %1325 = vmatmul.mubr.bf16.gmra.mrb[0].mxu0 %v421
      %v1326 = vpop.f32.mrb[0].mxu0
      %v1327 = vadd.f32 %v1264, %v1326
      %v1328 = vpop.f32.mrb[0].mxu0
      %v1329 = vadd.f32 %v1266, %v1328
      %v1330 = vpop.f32.mrb[0].mxu0
      %v1331 = vadd.f32 %v1268, %v1330
      %v1332 = vpop.f32.mrb[0].mxu0
      %v1333 = vadd.f32 %v1270, %v1332
      %1334 = vmatprep.mubr.bf16.mxu0 %v430
      %1335 = vmatmul.mubr.bf16.gmra.mrb[0].mxu0 %v429
      %v1336 = vpop.f32.mrb[0].mxu0
      %v1337 = vadd.f32 %v1274, %v1336
      %v1338 = vpop.f32.mrb[0].mxu0
      %v1339 = vadd.f32 %v1276, %v1338
      %v1340 = vpop.f32.mrb[0].mxu0
      %v1341 = vadd.f32 %v1278, %v1340
      %v1342 = vpop.f32.mrb[0].mxu0
      %v1343 = vadd.f32 %v1280, %v1342
      %1344 = vmatprep.mubr.bf16.mxu0 %v438
      %1345 = vmatmul.mubr.bf16.gmra.mrb[0].mxu0 %v437
      %v1346 = vpop.f32.mrb[0].mxu0
      %v1347 = vadd.f32 %v1284, %v1346
      %v1348 = vpop.f32.mrb[0].mxu0
      %v1349 = vadd.f32 %v1286, %v1348
      %v1350 = vpop.f32.mrb[0].mxu0
      %v1351 = vadd.f32 %v1288, %v1350
      %v1352 = vpop.f32.mrb[0].mxu0
      %v1353 = vadd.f32 %v1290, %v1352
      %1354 = vdwg.mxu0
      %v1355 = vxor.u32 %v1327, 2147483648
      %v1356 = vxor.u32 %v1329, 2147483648
      %v1357 = vxor.u32 %v1331, 2147483648
      %v1358 = vxor.u32 %v1333, 2147483648
      %v1359 = vxor.u32 %v1337, 2147483648
      %v1360 = vxor.u32 %v1339, 2147483648
      %v1361 = vxor.u32 %v1341, 2147483648
      %v1362 = vxor.u32 %v1343, 2147483648
      %v1363 = vxor.u32 %v1347, 2147483648
      %v1364 = vxor.u32 %v1349, 2147483648
      %v1365 = vxor.u32 %v1351, 2147483648
      %v1366 = vxor.u32 %v1353, 2147483648
      %v1367 = vmul.f32 %v1355, 1.442695
      %v1368 = vpow.pop %v1367
      %v1369 = vmul.f32 %v1356, 1.442695
      %v1370 = vpow.pop %v1369
      %v1371 = vmul.f32 %v1357, 1.442695
      %v1372 = vpow.pop %v1371
      %v1373 = vmul.f32 %v1358, 1.442695
      %v1374 = vpow.pop %v1373
      %v1375 = vmul.f32 %v1359, 1.442695
      %v1376 = vpow.pop %v1375
      %v1377 = vmul.f32 %v1360, 1.442695
      %v1378 = vpow.pop %v1377
      %v1379 = vmul.f32 %v1361, 1.442695
      %v1380 = vpow.pop %v1379
      %v1381 = vmul.f32 %v1362, 1.442695
      %v1382 = vpow.pop %v1381
      %v1383 = vmul.f32 %v1363, 1.442695
      %v1384 = vpow.pop %v1383
      %v1385 = vmul.f32 %v1364, 1.442695
      %v1386 = vpow.pop %v1385
      %v1387 = vmul.f32 %v1365, 1.442695
      %v1388 = vpow.pop %v1387
      %v1389 = vmul.f32 %v1366, 1.442695
      %v1390 = vpow.pop %v1389
      %v1391 = vadd.f32 %v1368, 1.0
      %v1392 = vadd.f32 %v1370, 1.0
      %v1393 = vadd.f32 %v1372, 1.0
      %v1394 = vadd.f32 %v1374, 1.0
      %v1395 = vadd.f32 %v1376, 1.0
      %v1396 = vadd.f32 %v1378, 1.0
      %v1397 = vadd.f32 %v1380, 1.0
      %v1398 = vadd.f32 %v1382, 1.0
      %v1399 = vadd.f32 %v1384, 1.0
      %v1400 = vadd.f32 %v1386, 1.0
      %v1401 = vadd.f32 %v1388, 1.0
      %v1402 = vadd.f32 %v1390, 1.0
      %v1403 = vrcp.pop %v1391
      %v1404 = vmul.f32 1.0, %v1403
      %v1405 = vrcp.pop %v1392
      %v1406 = vmul.f32 1.0, %v1405
      %v1407 = vrcp.pop %v1393
      %v1408 = vmul.f32 1.0, %v1407
      %v1409 = vrcp.pop %v1394
      %v1410 = vmul.f32 1.0, %v1409
      %v1411 = vrcp.pop %v1395
      %v1412 = vmul.f32 1.0, %v1411
      %v1413 = vrcp.pop %v1396
      %v1414 = vmul.f32 1.0, %v1413
      %v1415 = vrcp.pop %v1397
      %v1416 = vmul.f32 1.0, %v1415
      %v1417 = vrcp.pop %v1398
      %v1418 = vmul.f32 1.0, %v1417
      %v1419 = vrcp.pop %v1399
      %v1420 = vmul.f32 1.0, %v1419
      %v1421 = vrcp.pop %v1400
      %v1422 = vmul.f32 1.0, %v1421
      %v1423 = vrcp.pop %v1401
      %v1424 = vmul.f32 1.0, %v1423
      %v1425 = vrcp.pop %v1402
      %v1426 = vmul.f32 1.0, %v1425
      %1428 = vset.pattern.permute.xlu0 54
      %1429 = vperm.xlu0 %1428, %v1406
      %v1430 = vpop.permute.xlu0 %1429
      %1433 = vset.pattern.permute.xlu0 54
      %1434 = vperm.xlu0 %1433, %v1410
      %v1435 = vpop.permute.xlu0 %1434
      %1438 = vset.pattern.permute.xlu0 54
      %1439 = vperm.xlu0 %1438, %v1414
      %v1440 = vpop.permute.xlu0 %1439
      %1443 = vset.pattern.permute.xlu0 54
      %1444 = vperm.xlu0 %1443, %v1418
      %v1445 = vpop.permute.xlu0 %1444
      %1448 = vset.pattern.permute.xlu0 54
      %1449 = vperm.xlu0 %1448, %v1422
      %v1450 = vpop.permute.xlu0 %1449
      %1453 = vset.pattern.permute.xlu0 54
      %1454 = vperm.xlu0 %1453, %v1426
      %v1455 = vpop.permute.xlu0 %1454
      %v1457 = vmul.f32 %v1404, %v1430
      %v1458 = vmul.f32 %v1406, %v1430
      %v1459 = vmul.f32 %v1408, %v1435
      %v1460 = vmul.f32 %v1410, %v1435
      %v1461 = vmul.f32 %v1412, %v1440
      %v1462 = vmul.f32 %v1414, %v1440
      %v1463 = vmul.f32 %v1416, %v1445
      %v1464 = vmul.f32 %v1418, %v1445
      %v1465 = vmul.f32 %v1420, %v1450
      %v1466 = vmul.f32 %v1422, %v1450
      %v1467 = vmul.f32 %v1424, %v1455
      %v1468 = vmul.f32 %v1426, %v1455
      %1469 = vst [vmem:[%s177] sm:$0xff] %v1457
      %1470 = vst [vmem:[%s177 + $0x8] sm:$0xff] %v1458
      %1471 = vst [vmem:[%s177 + $0x10] sm:$0xff] %v1459
      %1472 = vst [vmem:[%s177 + $0x18] sm:$0xff] %v1460
      %1473 = vst [vmem:[%s177 + $0x20] sm:$0xff] %v1461
      %1474 = vst [vmem:[%s177 + $0x28] sm:$0xff] %v1462
      %1475 = vst [vmem:[%s177 + $0x30] sm:$0xff] %v1463
      %1476 = vst [vmem:[%s177 + $0x38] sm:$0xff] %v1464
      %1477 = vst [vmem:[%s177 + $0x40] sm:$0xff] %v1465
      %1478 = vst [vmem:[%s177 + $0x48] sm:$0xff] %v1466
      %1479 = vst [vmem:[%s177 + $0x50] sm:$0xff] %v1467
      %1480 = vst [vmem:[%s177 + $0x58] sm:$0xff] %v1468
      %s1481 = smul.u32 6, %s14
      %p1482 = scmp.lt.s32.totalorder %s1481, 11
      %s1483 = scalar_select %p1482, %s1481, 11
      %s1484 = smul.addr %s1483, 2
      %s1485 = smul.addr %s1484, 8
      %s1486 = scalar_lea.vmem %s3, %s1485
      // Predicated region
      $region33: #{two_stage_forward.1} parent=31 // pred_check
        %p1487 = pneg %p100
      $region34: #{two_stage_forward.1} parent=31 // pred_check_branch
        %1489 = sbr.rel (%p1487) target = $region36
      $region35: #{two_stage_forward.1} parent=31 // pred_region
        %s1490 = smul.u32 6, %s14
      $region36: #{two_stage_forward.1} parent=31 // pred_fallthru
        _
    $region32: #{two_stage_forward.1} parent=5 // pred_fallthru
      _
    %p1491 = scmp.le.s32.totalorder 2, %s9
    // Predicated region
    $region37: #{two_stage_forward.1} parent=5 // pred_check
      %p1492 = pneg %p1491
    $region38: #{two_stage_forward.1} parent=5 // pred_check_branch
      %1494 = sbr.rel (%p1492) target = $region40
    $region39: #{two_stage_forward.1} parent=5 // pred_region
      %s1495 = ssub.s32 %s9, 2
      // Predicated region
      $region41: #{two_stage_forward.1} parent=39 // pred_check
        %p1496 = pneg %p106
      $region42: #{two_stage_forward.1} parent=39 // pred_check_branch
        %1498 = sbr.rel (%p1496) target = $region44
      $region43: #{two_stage_forward.1} parent=39 // pred_region
        %s1499 = smul.u32 6, %s15
        %p1500 = scmp.lt.s32.totalorder %s1499, 11
        %s1501 = scalar_select %p1500, %s1499, 11
        %s1502 = smul.addr %s1501, 2
        %s1503 = smul.addr %s1502, 8
        %s1504 = scalar_lea.vmem %s3, %s1503
      $region44: #{two_stage_forward.1} parent=39 // pred_fallthru
        _
    $region40: #{two_stage_forward.1} parent=5 // pred_fallthru
      _
  $region6: #{two_stage_forward.1} parent=0 // loop_footer
    %s13 = sadd.s32 1, %s9
  $region7: #{two_stage_forward.1} parent=0 // loop_footer_branch
    %8 = sbr.rel target = $region3
  $region8: #{two_stage_forward.1} parent=0 // loop_exit
    _

</llo_original>
